<compile_context>
chip_gen: v6e
topology: v6e:2x2x1
jax: 0.10.0
libtpu: 0.0.40
codegen_flags: <defaults>
</compile_context>

<pallas_src>
import numpy as np
import jax
import jax.numpy as jnp
from jax.experimental import pallas as pl
from jax.experimental.pallas import tpu as pltpu


# ----------------------------------------------------------------------------
# Kernel 1: conv3x3 (stride 2, pad 1) + bias + ReLU as an im2col matmul.
# patches rows are (n, oh, ow), lane axis k = (di, dj, c); the (M, Cout) output
# therefore IS the NHWC feature map and reshaping to (N, Ho*Wo*Cout) is free.
# ----------------------------------------------------------------------------
def _conv_relu_kernel(p_ref, w_ref, b_ref, o_ref):
    acc = jnp.dot(p_ref[...], w_ref[...], preferred_element_type=jnp.float32)
    o_ref[...] = jnp.maximum(acc + b_ref[...], 0.0)


def cnn_forward(x_nchw, conv_w, conv_b, *, stride=2, pad=1):
    N, C, H, W = x_nchw.shape
    Cout, _, kh, kw = conv_w.shape
    Ho = (H + 2 * pad - kh) // stride + 1
    Wo = (W + 2 * pad - kw) // stride + 1

    # NHWC + spatial padding (the only transpose touches the raw input, not the
    # 9x im2col buffer).
    x_nhwc = jnp.transpose(x_nchw, (0, 2, 3, 1))
    xp = jnp.pad(x_nhwc, ((0, 0), (pad, pad), (pad, pad), (0, 0)))

    # im2col directly in (di, dj, c) lane order; the reshape below is a free
    # row-major view (no transpose of the kh*kw-times-larger patches buffer).
    # TODO(synk): fuse the kh*kw-tap gather into the kernel to avoid writing the
    # patches buffer to HBM at all.
    slices = [xp[:, di:di + stride * Ho:stride, dj:dj + stride * Wo:stride, :]
              for di in range(kh) for dj in range(kw)]
    patches = jnp.concatenate(slices, axis=-1).astype(jnp.bfloat16)
    patches = patches.reshape(N * Ho * Wo, kh * kw * C)

    # conv weight with matching (di, dj, c) row order; bf16 for the MXU.
    w_mat = conv_w.transpose(2, 3, 1, 0).reshape(kh * kw * C, Cout).astype(jnp.bfloat16)
    b_row = conv_b.reshape(1, Cout).astype(jnp.float32)

    M, K = patches.shape
    # Large row tiles (review: 512-1024); a single tile if the problem is small.
    if M <= 1024:
        tm, M_pad = M, M
    else:
        tm = 512
        M_pad = pl.cdiv(M, tm) * tm
        patches = jnp.pad(patches, ((0, M_pad - M), (0, 0)))

    out_flat = pl.pallas_call(
        _conv_relu_kernel,
        out_shape=jax.ShapeDtypeStruct((M_pad, Cout), jnp.float32),
        grid_spec=pltpu.PrefetchScalarGridSpec(
            num_scalar_prefetch=0,
            grid=(M_pad // tm,),
            in_specs=[pl.BlockSpec((tm, K), lambda i: (i, 0)),
                      pl.BlockSpec((K, Cout), lambda i: (0, 0)),
                      pl.BlockSpec((1, Cout), lambda i: (0, 0))],
            out_specs=pl.BlockSpec((tm, Cout), lambda i: (i, 0))),
        compiler_params=pltpu.CompilerParams(dimension_semantics=("parallel",)),
    )(patches, w_mat, b_row)

    # rows are (n, oh, ow) with Cout on lanes -> per-image feature vector is a
    # free view; feature order is (oh, ow, cout) (handled by permuting w_ih).
    feat = out_flat[:M].reshape(N, Ho * Wo * Cout)
    return feat, (Ho, Wo, Cout)


# ----------------------------------------------------------------------------
# Kernel 2: full LSTM in a single pallas_call.
#   - one batched (B*T, F) @ (F, 4H) input projection (bias hoisted) into VMEM
#   - unrolled time loop with only the tiny h @ W_hh matmul on the serial path
#   - h/c live in the resident output blocks; outputs written batch-major.
# ----------------------------------------------------------------------------
def _make_lstm_kernel(B, T, Hd):
    def _lstm_kernel(feat_ref, mask_ref, wih_ref, whh_ref, b_ref,
                     h0_ref, c0_ref, out_ref, hn_ref, cn_ref, gx_ref):
        # Batched input projection: one well-shaped MXU matmul, bias added once.
        gx_ref[...] = (jnp.dot(feat_ref[...].astype(jnp.bfloat16), wih_ref[...],
                               preferred_element_type=jnp.float32)
                       + b_ref[...])

        hn_ref[...] = h0_ref[...]
        cn_ref[...] = c0_ref[...]
        whh = whh_ref[...]                       # hoisted out of the time loop

        def step(t, carry):
            h_prev = hn_ref[...]
            c_prev = cn_ref[...]
            # Gather the B rows of timestep t directly from the batch-major
            # buffers (no (B,T,*)->(T,B,*) transpose anywhere).
            gx_t = jnp.concatenate(
                [gx_ref[pl.ds(b * T + t, 1), :] for b in range(B)], axis=0)   # (B, 4H)
            m_t = jnp.concatenate(
                [mask_ref[pl.ds(b * T + t, 1), :] for b in range(B)], axis=0)  # (B, 1)

            gates = gx_t + jnp.dot(h_prev, whh, preferred_element_type=jnp.float32)
            i_g = jax.nn.sigmoid(gates[:, 0:Hd])
            f_g = jax.nn.sigmoid(gates[:, Hd:2 * Hd])
            g_g = jnp.tanh(gates[:, 2 * Hd:3 * Hd])
            o_g = jax.nn.sigmoid(gates[:, 3 * Hd:4 * Hd])

            c_new = f_g * c_prev + i_g * g_g
            h_new = o_g * jnp.tanh(c_new)

            # pack_padded semantics: padded steps do not advance h/c, emit 0.
            hn_ref[...] = h_prev + m_t * (h_new - h_prev)
            cn_ref[...] = c_prev + m_t * (c_new - c_prev)
            mh = m_t * h_new
            for b in range(B):
                out_ref[pl.ds(b * T + t, 1), :] = mh[b:b + 1, :]
            return carry

        jax.lax.fori_loop(0, T, step, 0, unroll=True)

    return _lstm_kernel


def lstm_forward(feat, B, T, x_lens, w_ih_perm, w_hh, b_gates, h0, c0):
    Hd = h0.shape[-1]
    F = feat.shape[-1]
    G = 4 * Hd

    # validity mask, batch-major to match feat rows (row index = b*T + t)
    mask = (jnp.arange(T)[None, :] < x_lens[:, None]).astype(jnp.float32)
    mask = mask.reshape(B * T, 1)

    kernel = _make_lstm_kernel(B, T, Hd)
    out_flat, h_n, c_n = pl.pallas_call(
        kernel,
        out_shape=(jax.ShapeDtypeStruct((B * T, Hd), jnp.float32),
                   jax.ShapeDtypeStruct((B, Hd), jnp.float32),
                   jax.ShapeDtypeStruct((B, Hd), jnp.float32)),
        grid_spec=pltpu.PrefetchScalarGridSpec(
            num_scalar_prefetch=0,
            grid=(1,),
            in_specs=[pl.BlockSpec((B * T, F), lambda i: (0, 0)),
                      pl.BlockSpec((B * T, 1), lambda i: (0, 0)),
                      pl.BlockSpec((F, G), lambda i: (0, 0)),
                      pl.BlockSpec((Hd, G), lambda i: (0, 0)),
                      pl.BlockSpec((1, G), lambda i: (0, 0)),
                      pl.BlockSpec((B, Hd), lambda i: (0, 0)),
                      pl.BlockSpec((B, Hd), lambda i: (0, 0))],
            out_specs=[pl.BlockSpec((B * T, Hd), lambda i: (0, 0)),
                       pl.BlockSpec((B, Hd), lambda i: (0, 0)),
                       pl.BlockSpec((B, Hd), lambda i: (0, 0))],
            scratch_shapes=[pltpu.VMEM((B * T, G), jnp.float32)]),
        compiler_params=pltpu.CompilerParams(dimension_semantics=("arbitrary",)),
    )(feat, mask, w_ih_perm, w_hh, b_gates, h0, c0)

    outputs = out_flat.reshape(B, T, Hd)          # free view (rows already batch-major)
    return outputs, x_lens, h_n[None], c_n[None]  # hidden/cell: (1, B, H)


# ----------------------------------------------------------------------------
# FullModel_no_motion forward
# ----------------------------------------------------------------------------
def full_model_no_motion(params, x, x_lens, body_motor, imu_linear, imu_gyro,
                         hidden_state=None, hidden_cell=None):
    # body_motor / imu_linear / imu_gyro are unused (this is the "no_motion" model)
    B, T, C, H, W = x.shape
    x_flat = x.reshape(B * T, C, H, W)            # torch.flatten(x, 0, 1)
    feat, (Ho, Wo, Cout) = cnn_forward(x_flat, params["conv_w"], params["conv_b"])

    Hd = params["w_hh"].shape[0]
    G = 4 * Hd
    # Static reorder of w_ih rows from torch's NCHW feature order (cout, oh, ow)
    # to the kernel's NHWC order (oh, ow, cout): lets the conv output feed the
    # LSTM with zero transposes.  Done once; cast to bf16 for the MXU.
    w_ih_perm = (params["w_ih"].reshape(Cout, Ho, Wo, G)
                 .transpose(1, 2, 0, 3).reshape(Ho * Wo * Cout, G)
                 .astype(jnp.bfloat16))
    w_hh = params["w_hh"].astype(jnp.float32)     # recurrent path stays in f32
    b_gates = params["b_gates"].astype(jnp.float32)

    h0 = (jnp.zeros((B, Hd), jnp.float32) if hidden_state is None
          else hidden_state.reshape(B, Hd).astype(jnp.float32))
    c0 = (jnp.zeros((B, Hd), jnp.float32) if hidden_cell is None
          else hidden_cell.reshape(B, Hd).astype(jnp.float32))

    return lstm_forward(feat, B, T, x_lens, w_ih_perm, w_hh, b_gates, h0, c0)


# ----------------------------------------------------------------------------
# Pure-JAX f32 reference (for a silent numerical check)
# ----------------------------------------------------------------------------
def _reference(params, x, x_lens):
    B, T, C, H, W = x.shape
    x_flat = x.reshape(B * T, C, H, W)
    conv = jax.lax.conv_general_dilated(
        x_flat, params["conv_w"], window_strides=(2, 2), padding=((1, 1), (1, 1)),
        dimension_numbers=("NCHW", "OIHW", "NCHW"))
    conv = jnp.maximum(conv + params["conv_b"][None, :, None, None], 0.0)
    feat = conv.reshape(B, T, -1)

    Hd = params["w_hh"].shape[0]
    w_ih, w_hh, b = params["w_ih"], params["w_hh"], params["b_gates"]
    mask = (jnp.arange(T)[:, None] < x_lens[None, :]).astype(jnp.float32)[:, :, None]

    def step(carry, inp):
        h, c = carry
        x_t, m_t = inp
        gates = x_t @ w_ih + h @ w_hh + b
        i = jax.nn.sigmoid(gates[:, :Hd])
        f = jax.nn.sigmoid(gates[:, Hd:2 * Hd])
        g = jnp.tanh(gates[:, 2 * Hd:3 * Hd])
        o = jax.nn.sigmoid(gates[:, 3 * Hd:])
        c_new = f * c + i * g
        h_new = o * jnp.tanh(c_new)
        h_next = m_t * h_new + (1.0 - m_t) * h
        c_next = m_t * c_new + (1.0 - m_t) * c
        return (h_next, c_next), m_t * h_new

    h0 = jnp.zeros((B, Hd), jnp.float32)
    c0 = jnp.zeros((B, Hd), jnp.float32)
    (h_n, c_n), out_tbh = jax.lax.scan(step, (h0, c0),
                                       (jnp.transpose(feat, (1, 0, 2)), mask))
    return jnp.transpose(out_tbh, (1, 0, 2)), x_lens, h_n[None], c_n[None]


if __name__ == "__main__":
    # Small shapes consistent with the module's forward
    B, T, C, H, W = 2, 6, 3, 16, 16
    Cout, Hd = 8, 32
    F = Cout * (H // 2) * (W // 2)          # conv stride 2 -> 8x8 spatial, F = 512

    key = jax.random.PRNGKey(0)
    k1, k2, k3, k4, k5, kx = jax.random.split(key, 6)
    params = {
        "conv_w": 0.1 * jax.random.normal(k1, (Cout, C, 3, 3), jnp.float32),
        "conv_b": 0.1 * jax.random.normal(k2, (Cout,), jnp.float32),
        "w_ih": 0.05 * jax.random.normal(k3, (F, 4 * Hd), jnp.float32),
        "w_hh": 0.05 * jax.random.normal(k4, (Hd, 4 * Hd), jnp.float32),
        "b_gates": 0.05 * jax.random.normal(k5, (1, 4 * Hd), jnp.float32),  # b_ih + b_hh
    }

    x = jax.random.normal(kx, (B, T, C, H, W), jnp.float32)
    x_lens = jnp.array([6, 4], jnp.int32)
    body_motor = jnp.zeros((B, T, 4), jnp.float32)   # unused by the no_motion model
    imu_linear = jnp.zeros((B, T, 3), jnp.float32)   # unused
    imu_gyro = jnp.zeros((B, T, 3), jnp.float32)     # unused

    outputs, output_lengths, hidden_state, cell_state = full_model_no_motion(
        params, x, x_lens, body_motor, imu_linear, imu_gyro)
    jax.block_until_ready((outputs, output_lengths, hidden_state, cell_state))

    # silent correctness check against pure-JAX f32 reference (bf16 matmul path)
    ref_out, ref_len, ref_h, ref_c = _reference(params, x, x_lens)
    assert np.allclose(np.asarray(outputs), np.asarray(ref_out), rtol=1e-2, atol=1e-2)
    assert np.allclose(np.asarray(hidden_state), np.asarray(ref_h), rtol=1e-2, atol=1e-2)
    assert np.allclose(np.asarray(cell_state), np.asarray(ref_c), rtol=1e-2, atol=1e-2)
    assert np.array_equal(np.asarray(output_lengths), np.asarray(ref_len))

    print("KERNEL_OK")
</pallas_src>

<mosaic_0001>
module attributes {stable_mosaic.version = 11 : i64} {
  func.func @_conv_relu_kernel(%arg0: i32, %arg1: memref<768x27xbf16, #tpu.memory_space<vmem>>, %arg2: memref<27x8xbf16, #tpu.memory_space<vmem>>, %arg3: memref<1x8xf32, #tpu.memory_space<vmem>>, %arg4: memref<768x8xf32, #tpu.memory_space<vmem>>) attributes {dimension_semantics = [#tpu.dimension_semantics<parallel>], iteration_bounds = array<i64: 1>, scalar_prefetch = 0 : i64, scratch_operands = 0 : i64, tpu.core_type = #tpu.core_type<tc>, window_params = [{transform_indices = @transform_0, window_bounds = array<i64: 768, 27>}, {pipeline_mode = #tpu.pipeline_mode<synchronous>, transform_indices = @transform_1, window_bounds = array<i64: 27, 8>}, {pipeline_mode = #tpu.pipeline_mode<synchronous>, transform_indices = @transform_2, window_bounds = array<i64: 1, 8>}, {transform_indices = @transform_3, window_bounds = array<i64: 768, 8>}]} {
    %c0 = arith.constant 0 : index
    %c0_0 = arith.constant 0 : index
    %0 = vector.load %arg1[%c0, %c0_0] : memref<768x27xbf16, #tpu.memory_space<vmem>>, vector<768x27xbf16>
    %c0_1 = arith.constant 0 : index
    %c0_2 = arith.constant 0 : index
    %1 = vector.load %arg2[%c0_1, %c0_2] : memref<27x8xbf16, #tpu.memory_space<vmem>>, vector<27x8xbf16>
    %cst = arith.constant dense<0.000000e+00> : vector<768x8xf32>
    %2 = tpu.matmul %0, %1, %cst {dimension_numbers = #tpu.dot_dimension_numbers<[1], [0], [0], [1], [0, 0, 1, 1], [], []>} : vector<768x27xbf16>, vector<27x8xbf16>, vector<768x8xf32> -> vector<768x8xf32>
    %c0_3 = arith.constant 0 : index
    %c0_4 = arith.constant 0 : index
    %3 = vector.load %arg3[%c0_3, %c0_4] : memref<1x8xf32, #tpu.memory_space<vmem>>, vector<1x8xf32>
    %4 = vector.broadcast %3 : vector<1x8xf32> to vector<768x8xf32>
    %5 = arith.addf %2, %4 : vector<768x8xf32>
    %cst_5 = arith.constant 0.000000e+00 : f32
    %6 = vector.broadcast %cst_5 : f32 to vector<768x8xf32>
    %7 = arith.maximumf %5, %6 : vector<768x8xf32>
    %c0_6 = arith.constant 0 : index
    %c0_7 = arith.constant 0 : index
    %8 = vector.load %arg4[%c0_6, %c0_7] : memref<768x8xf32, #tpu.memory_space<vmem>>, vector<768x8xf32>
    tpu.vector_store %arg4[%c0_6, %c0_7], %7 {strides = array<i32>} : memref<768x8xf32, #tpu.memory_space<vmem>>, vector<768x8xf32>,
    return
  }
  func.func @transform_0(%arg0: i32) -> (i32, i32) {
    %c0_i32 = arith.constant 0 : i32
    %c0_i32_0 = arith.constant 0 : i32
    return %arg0, %c0_i32 : i32, i32
  }
  func.func @transform_1(%arg0: i32) -> (i32, i32) {
    %c0_i32 = arith.constant 0 : i32
    %c0_i32_0 = arith.constant 0 : i32
    %c0_i32_1 = arith.constant 0 : i32
    return %c0_i32, %c0_i32_0 : i32, i32
  }
  func.func @transform_2(%arg0: i32) -> (i32, i32) {
    %c0_i32 = arith.constant 0 : i32
    %c0_i32_0 = arith.constant 0 : i32
    %c0_i32_1 = arith.constant 0 : i32
    return %c0_i32, %c0_i32_0 : i32, i32
  }
  func.func @transform_3(%arg0: i32) -> (i32, i32) {
    %c0_i32 = arith.constant 0 : i32
    %c0_i32_0 = arith.constant 0 : i32
    return %arg0, %c0_i32 : i32, i32
  }
}

</mosaic_0001>

<llo_original>
// kernel: tpu_custom_call.1
$region0: #{tpu_custom_call.1}
  #allocation0 [shape = 'u32[]', space=smem, size = 0x4, offset = 0x4, fixed_abs, tag = 'smem constant byte address 0x4 - core index']
  #allocation1 [shape = 'u32[144,128]{1,0:T(1,128)}', space=vmem, size = 0x12000, scoped, tag = 'internal scratch']
  %s0 = inlined_call_operand.vmem [shape: bf16[768,27], index: 0, kind: input, shape index: {}]
  %s1 = inlined_call_operand.vmem [shape: bf16[27,8], index: 1, kind: input, shape index: {}]
  %s2 = inlined_call_operand.vmem [shape: f32[1,8], index: 2, kind: input, shape index: {}]
  %s3 = inlined_call_operand.vmem [shape: f32[768,8], index: 3, kind: output, shape index: {}]
  %s4 = sld [smem:[#allocation0]]
  $region22: #{tpu_custom_call.1} parent=0
    _
  %s6 = ssub.s32 1, %s4
  %s7 = scalar_select 0, %s6, %s4
  // Predicated region
  $region2: #{tpu_custom_call.1} parent=0 // pred_check
    _
  $region3: #{tpu_custom_call.1} parent=0 // pred_check_branch
    %9 = sbr.rel (0) target = $region5
  $region4: #{tpu_custom_call.1} parent=0 // pred_region
    _
  $region5: #{tpu_custom_call.1} parent=0 // pred_fallthru
    _
  // Predicated region
  $region6: #{tpu_custom_call.1} parent=0 // pred_check
    _
  $region7: #{tpu_custom_call.1} parent=0 // pred_check_branch
    %11 = sbr.rel (0) target = $region9
  $region8: #{tpu_custom_call.1} parent=0 // pred_region
    _
  $region9: #{tpu_custom_call.1} parent=0 // pred_fallthru
    _
  // Predicated region
  $region10: #{tpu_custom_call.1} parent=0 // pred_check
    _
  $region11: #{tpu_custom_call.1} parent=0 // pred_check_branch
    %13 = sbr.rel (0) target = $region13
  $region12: #{tpu_custom_call.1} parent=0 // pred_region
    _
  $region13: #{tpu_custom_call.1} parent=0 // pred_fallthru
    _
  %v15 = vld [vmem:[%s0] sm:$0xf]
  %v16 = vld [vmem:[%s0 + $0x4] sm:$0xf]
  %v17 = vld [vmem:[%s0 + $0x8] sm:$0xf]
  %v18 = vld [vmem:[%s0 + $0xc] sm:$0xf]
  %v19 = vld [vmem:[%s0 + $0x10] sm:$0xf]
  %v20 = vld [vmem:[%s0 + $0x14] sm:$0xf]
  %v21 = vld [vmem:[%s0 + $0x18] sm:$0xf]
  %v22 = vld [vmem:[%s0 + $0x1c] sm:$0xf]
  %v23 = vld [vmem:[%s0 + $0x20] sm:$0xf]
  %v24 = vld [vmem:[%s0 + $0x24] sm:$0xf]
  %v25 = vld [vmem:[%s0 + $0x28] sm:$0xf]
  %v26 = vld [vmem:[%s0 + $0x2c] sm:$0xf]
  %v27 = vld [vmem:[%s0 + $0x30] sm:$0xf]
  %v28 = vld [vmem:[%s0 + $0x34] sm:$0xf]
  %v29 = vld [vmem:[%s0 + $0x38] sm:$0xf]
  %v30 = vld [vmem:[%s0 + $0x3c] sm:$0xf]
  %v31 = vld [vmem:[%s0 + $0x40] sm:$0xf]
  %v32 = vld [vmem:[%s0 + $0x44] sm:$0xf]
  %v33 = vld [vmem:[%s0 + $0x48] sm:$0xf]
  %v34 = vld [vmem:[%s0 + $0x4c] sm:$0xf]
  %v35 = vld [vmem:[%s0 + $0x50] sm:$0xf]
  %v36 = vld [vmem:[%s0 + $0x54] sm:$0xf]
  %v37 = vld [vmem:[%s0 + $0x58] sm:$0xf]
  %v38 = vld [vmem:[%s0 + $0x5c] sm:$0xf]
  %v39 = vld [vmem:[%s0 + $0x60] sm:$0xf]
  %v40 = vld [vmem:[%s0 + $0x64] sm:$0xf]
  %v41 = vld [vmem:[%s0 + $0x68] sm:$0xf]
  %v42 = vld [vmem:[%s0 + $0x6c] sm:$0xf]
  %v43 = vld [vmem:[%s0 + $0x70] sm:$0xf]
  %v44 = vld [vmem:[%s0 + $0x74] sm:$0xf]
  %v45 = vld [vmem:[%s0 + $0x78] sm:$0xf]
  %v46 = vld [vmem:[%s0 + $0x7c] sm:$0xf]
  %v47 = vld [vmem:[%s0 + $0x80] sm:$0xf]
  %v48 = vld [vmem:[%s0 + $0x84] sm:$0xf]
  %v49 = vld [vmem:[%s0 + $0x88] sm:$0xf]
  %v50 = vld [vmem:[%s0 + $0x8c] sm:$0xf]
  %v51 = vld [vmem:[%s0 + $0x90] sm:$0xf]
  %v52 = vld [vmem:[%s0 + $0x94] sm:$0xf]
  %v53 = vld [vmem:[%s0 + $0x98] sm:$0xf]
  %v54 = vld [vmem:[%s0 + $0x9c] sm:$0xf]
  %v55 = vld [vmem:[%s0 + $0xa0] sm:$0xf]
  %v56 = vld [vmem:[%s0 + $0xa4] sm:$0xf]
  %v57 = vld [vmem:[%s0 + $0xa8] sm:$0xf]
  %v58 = vld [vmem:[%s0 + $0xac] sm:$0xf]
  %v59 = vld [vmem:[%s0 + $0xb0] sm:$0xf]
  %v60 = vld [vmem:[%s0 + $0xb4] sm:$0xf]
  %v61 = vld [vmem:[%s0 + $0xb8] sm:$0xf]
  %v62 = vld [vmem:[%s0 + $0xbc] sm:$0xf]
  %v63 = vld [vmem:[%s0 + $0xc0] sm:$0xf]
  %v64 = vld [vmem:[%s0 + $0xc4] sm:$0xf]
  %v65 = vld [vmem:[%s0 + $0xc8] sm:$0xf]
  %v66 = vld [vmem:[%s0 + $0xcc] sm:$0xf]
  %v67 = vld [vmem:[%s0 + $0xd0] sm:$0xf]
  %v68 = vld [vmem:[%s0 + $0xd4] sm:$0xf]
  %v69 = vld [vmem:[%s0 + $0xd8] sm:$0xf]
  %v70 = vld [vmem:[%s0 + $0xdc] sm:$0xf]
  %v71 = vld [vmem:[%s0 + $0xe0] sm:$0xf]
  %v72 = vld [vmem:[%s0 + $0xe4] sm:$0xf]
  %v73 = vld [vmem:[%s0 + $0xe8] sm:$0xf]
  %v74 = vld [vmem:[%s0 + $0xec] sm:$0xf]
  %v75 = vld [vmem:[%s0 + $0xf0] sm:$0xf]
  %v76 = vld [vmem:[%s0 + $0xf4] sm:$0xf]
  %v77 = vld [vmem:[%s0 + $0xf8] sm:$0xf]
  %v78 = vld [vmem:[%s0 + $0xfc] sm:$0xf]
  %v79 = vld [vmem:[%s0 + $0x100] sm:$0xf]
  %v80 = vld [vmem:[%s0 + $0x104] sm:$0xf]
  %v81 = vld [vmem:[%s0 + $0x108] sm:$0xf]
  %v82 = vld [vmem:[%s0 + $0x10c] sm:$0xf]
  %v83 = vld [vmem:[%s0 + $0x110] sm:$0xf]
  %v84 = vld [vmem:[%s0 + $0x114] sm:$0xf]
  %v85 = vld [vmem:[%s0 + $0x118] sm:$0xf]
  %v86 = vld [vmem:[%s0 + $0x11c] sm:$0xf]
  %v87 = vld [vmem:[%s0 + $0x120] sm:$0xf]
  %v88 = vld [vmem:[%s0 + $0x124] sm:$0xf]
  %v89 = vld [vmem:[%s0 + $0x128] sm:$0xf]
  %v90 = vld [vmem:[%s0 + $0x12c] sm:$0xf]
  %v91 = vld [vmem:[%s0 + $0x130] sm:$0xf]
  %v92 = vld [vmem:[%s0 + $0x134] sm:$0xf]
  %v93 = vld [vmem:[%s0 + $0x138] sm:$0xf]
  %v94 = vld [vmem:[%s0 + $0x13c] sm:$0xf]
  %v95 = vld [vmem:[%s0 + $0x140] sm:$0xf]
  %v96 = vld [vmem:[%s0 + $0x144] sm:$0xf]
  %v97 = vld [vmem:[%s0 + $0x148] sm:$0xf]
  %v98 = vld [vmem:[%s0 + $0x14c] sm:$0xf]
  %v99 = vld [vmem:[%s0 + $0x150] sm:$0xf]
  %v100 = vld [vmem:[%s0 + $0x154] sm:$0xf]
  %v101 = vld [vmem:[%s0 + $0x158] sm:$0xf]
  %v102 = vld [vmem:[%s0 + $0x15c] sm:$0xf]
  %v103 = vld [vmem:[%s0 + $0x160] sm:$0xf]
  %v104 = vld [vmem:[%s0 + $0x164] sm:$0xf]
  %v105 = vld [vmem:[%s0 + $0x168] sm:$0xf]
  %v106 = vld [vmem:[%s0 + $0x16c] sm:$0xf]
  %v107 = vld [vmem:[%s0 + $0x170] sm:$0xf]
  %v108 = vld [vmem:[%s0 + $0x174] sm:$0xf]
  %v109 = vld [vmem:[%s0 + $0x178] sm:$0xf]
  %v110 = vld [vmem:[%s0 + $0x17c] sm:$0xf]
  %v111 = vld [vmem:[%s1] sm:$0xf]
  %v112 = vld [vmem:[%s1 + $0x4] sm:$0xf]
  %v113 = vld [vmem:[%s1 + $0x8] sm:$0xf]
  %v114 = vld [vmem:[%s1 + $0xc] sm:$0x3]
  %v115 = vld [vmem:[%s2] sm:$0x1]
  %v117 = vlaneseq
  %v118 = vshrl.u32 %v117, 7
  %v119 = vsub.s32 0, %v118
  %v120 = vrot.slane %v115, %v119
  %v218 = vunpack.c.l.b16 %v15
  %v219 = vunpack.c.l.b16 %v16
  %v220 = vunpack.c.l.b16 %v17
  %v221 = vunpack.c.l.b16 %v18
  %v222 = vunpack.c.l.b16 %v19
  %v223 = vunpack.c.l.b16 %v20
  %v224 = vunpack.c.l.b16 %v21
  %v225 = vunpack.c.l.b16 %v22
  %v226 = vunpack.c.l.b16 %v23
  %v227 = vunpack.c.l.b16 %v24
  %v228 = vunpack.c.l.b16 %v25
  %v229 = vunpack.c.l.b16 %v26
  %v230 = vunpack.c.l.b16 %v27
  %v231 = vunpack.c.l.b16 %v28
  %v232 = vunpack.c.l.b16 %v29
  %v233 = vunpack.c.l.b16 %v30
  %v234 = vunpack.c.l.b16 %v31
  %v235 = vunpack.c.l.b16 %v32
  %v236 = vunpack.c.l.b16 %v33
  %v237 = vunpack.c.l.b16 %v34
  %v238 = vunpack.c.l.b16 %v35
  %v239 = vunpack.c.l.b16 %v36
  %v240 = vunpack.c.l.b16 %v37
  %v241 = vunpack.c.l.b16 %v38
  %v242 = vunpack.c.l.b16 %v39
  %v243 = vunpack.c.l.b16 %v40
  %v244 = vunpack.c.l.b16 %v41
  %v245 = vunpack.c.l.b16 %v42
  %v246 = vunpack.c.l.b16 %v43
  %v247 = vunpack.c.l.b16 %v44
  %v248 = vunpack.c.l.b16 %v45
  %v249 = vunpack.c.l.b16 %v46
  %v250 = vunpack.c.l.b16 %v47
  %v251 = vunpack.c.l.b16 %v48
  %v252 = vunpack.c.l.b16 %v49
  %v253 = vunpack.c.l.b16 %v50
  %v254 = vunpack.c.l.b16 %v51
  %v255 = vunpack.c.l.b16 %v52
  %v256 = vunpack.c.l.b16 %v53
  %v257 = vunpack.c.l.b16 %v54
  %v258 = vunpack.c.l.b16 %v55
  %v259 = vunpack.c.l.b16 %v56
  %v260 = vunpack.c.l.b16 %v57
  %v261 = vunpack.c.l.b16 %v58
  %v262 = vunpack.c.l.b16 %v59
  %v263 = vunpack.c.l.b16 %v60
  %v264 = vunpack.c.l.b16 %v61
  %v265 = vunpack.c.l.b16 %v62
  %v266 = vunpack.c.l.b16 %v63
  %v267 = vunpack.c.l.b16 %v64
  %v268 = vunpack.c.l.b16 %v65
  %v269 = vunpack.c.l.b16 %v66
  %v270 = vunpack.c.l.b16 %v67
  %v271 = vunpack.c.l.b16 %v68
  %v272 = vunpack.c.l.b16 %v69
  %v273 = vunpack.c.l.b16 %v70
  %v274 = vunpack.c.l.b16 %v71
  %v275 = vunpack.c.l.b16 %v72
  %v276 = vunpack.c.l.b16 %v73
  %v277 = vunpack.c.l.b16 %v74
  %v278 = vunpack.c.l.b16 %v75
  %v279 = vunpack.c.l.b16 %v76
  %v280 = vunpack.c.l.b16 %v77
  %v281 = vunpack.c.l.b16 %v78
  %v282 = vunpack.c.l.b16 %v79
  %v283 = vunpack.c.l.b16 %v80
  %v284 = vunpack.c.l.b16 %v81
  %v285 = vunpack.c.l.b16 %v82
  %v286 = vunpack.c.l.b16 %v83
  %v287 = vunpack.c.l.b16 %v84
  %v288 = vunpack.c.l.b16 %v85
  %v289 = vunpack.c.l.b16 %v86
  %v290 = vunpack.c.l.b16 %v87
  %v291 = vunpack.c.l.b16 %v88
  %v292 = vunpack.c.l.b16 %v89
  %v293 = vunpack.c.l.b16 %v90
  %v294 = vunpack.c.l.b16 %v91
  %v295 = vunpack.c.l.b16 %v92
  %v296 = vunpack.c.l.b16 %v93
  %v297 = vunpack.c.l.b16 %v94
  %v298 = vunpack.c.l.b16 %v95
  %v299 = vunpack.c.l.b16 %v96
  %v300 = vunpack.c.l.b16 %v97
  %v301 = vunpack.c.l.b16 %v98
  %v302 = vunpack.c.l.b16 %v99
  %v303 = vunpack.c.l.b16 %v100
  %v304 = vunpack.c.l.b16 %v101
  %v305 = vunpack.c.l.b16 %v102
  %v306 = vunpack.c.l.b16 %v103
  %v307 = vunpack.c.l.b16 %v104
  %v308 = vunpack.c.l.b16 %v105
  %v309 = vunpack.c.l.b16 %v106
  %v310 = vunpack.c.l.b16 %v107
  %v311 = vunpack.c.l.b16 %v108
  %v312 = vunpack.c.l.b16 %v109
  %v313 = vunpack.c.l.b16 %v110
  %v314 = vpack.c.b16 %v219, %v218
  %v315 = vpack.c.b16 %v221, %v220
  %v316 = vpack.c.b16 %v223, %v222
  %v317 = vpack.c.b16 %v225, %v224
  %v318 = vpack.c.b16 %v227, %v226
  %v319 = vpack.c.b16 %v229, %v228
  %v320 = vpack.c.b16 %v231, %v230
  %v321 = vpack.c.b16 %v233, %v232
  %v322 = vpack.c.b16 %v235, %v234
  %v323 = vpack.c.b16 %v237, %v236
  %v324 = vpack.c.b16 %v239, %v238
  %v325 = vpack.c.b16 %v241, %v240
  %v326 = vpack.c.b16 %v243, %v242
  %v327 = vpack.c.b16 %v245, %v244
  %v328 = vpack.c.b16 %v247, %v246
  %v329 = vpack.c.b16 %v249, %v248
  %v330 = vpack.c.b16 %v251, %v250
  %v331 = vpack.c.b16 %v253, %v252
  %v332 = vpack.c.b16 %v255, %v254
  %v333 = vpack.c.b16 %v257, %v256
  %v334 = vpack.c.b16 %v259, %v258
  %v335 = vpack.c.b16 %v261, %v260
  %v336 = vpack.c.b16 %v263, %v262
  %v337 = vpack.c.b16 %v265, %v264
  %v338 = vpack.c.b16 %v267, %v266
  %v339 = vpack.c.b16 %v269, %v268
  %v340 = vpack.c.b16 %v271, %v270
  %v341 = vpack.c.b16 %v273, %v272
  %v342 = vpack.c.b16 %v275, %v274
  %v343 = vpack.c.b16 %v277, %v276
  %v344 = vpack.c.b16 %v279, %v278
  %v345 = vpack.c.b16 %v281, %v280
  %v346 = vpack.c.b16 %v283, %v282
  %v347 = vpack.c.b16 %v285, %v284
  %v348 = vpack.c.b16 %v287, %v286
  %v349 = vpack.c.b16 %v289, %v288
  %v350 = vpack.c.b16 %v291, %v290
  %v351 = vpack.c.b16 %v293, %v292
  %v352 = vpack.c.b16 %v295, %v294
  %v353 = vpack.c.b16 %v297, %v296
  %v354 = vpack.c.b16 %v299, %v298
  %v355 = vpack.c.b16 %v301, %v300
  %v356 = vpack.c.b16 %v303, %v302
  %v357 = vpack.c.b16 %v305, %v304
  %v358 = vpack.c.b16 %v307, %v306
  %v359 = vpack.c.b16 %v309, %v308
  %v360 = vpack.c.b16 %v311, %v310
  %v361 = vpack.c.b16 %v313, %v312
  %v366 = vunpack.c.l.b16 %v111
  %v367 = vunpack.c.l.b16 %v112
  %v368 = vunpack.c.l.b16 %v113
  %v369 = vunpack.c.l.b16 %v114
  %v370 = vpack.c.b16 %v367, %v366
  %v371 = vpack.c.b16 %v369, %v368
  %vm373 = vcmask 220160
  %v375 = vsel %vm373, %v314, 0
  %v378 = vsel %vm373, %v315, 0
  %v381 = vsel %vm373, %v316, 0
  %v384 = vsel %vm373, %v317, 0
  %v387 = vsel %vm373, %v318, 0
  %v390 = vsel %vm373, %v319, 0
  %v393 = vsel %vm373, %v320, 0
  %v396 = vsel %vm373, %v321, 0
  %v399 = vsel %vm373, %v322, 0
  %v402 = vsel %vm373, %v323, 0
  %v405 = vsel %vm373, %v324, 0
  %v408 = vsel %vm373, %v325, 0
  %v411 = vsel %vm373, %v326, 0
  %v414 = vsel %vm373, %v327, 0
  %v417 = vsel %vm373, %v328, 0
  %v420 = vsel %vm373, %v329, 0
  %v423 = vsel %vm373, %v330, 0
  %v426 = vsel %vm373, %v331, 0
  %v429 = vsel %vm373, %v332, 0
  %v432 = vsel %vm373, %v333, 0
  %v435 = vsel %vm373, %v334, 0
  %v438 = vsel %vm373, %v335, 0
  %v441 = vsel %vm373, %v336, 0
  %v444 = vsel %vm373, %v337, 0
  %v447 = vsel %vm373, %v338, 0
  %v450 = vsel %vm373, %v339, 0
  %v453 = vsel %vm373, %v340, 0
  %v456 = vsel %vm373, %v341, 0
  %v459 = vsel %vm373, %v342, 0
  %v462 = vsel %vm373, %v343, 0
  %v465 = vsel %vm373, %v344, 0
  %v468 = vsel %vm373, %v345, 0
  %v471 = vsel %vm373, %v346, 0
  %v474 = vsel %vm373, %v347, 0
  %v477 = vsel %vm373, %v348, 0
  %v480 = vsel %vm373, %v349, 0
  %v483 = vsel %vm373, %v350, 0
  %v486 = vsel %vm373, %v351, 0
  %v489 = vsel %vm373, %v352, 0
  %v492 = vsel %vm373, %v353, 0
  %v495 = vsel %vm373, %v354, 0
  %v498 = vsel %vm373, %v355, 0
  %v501 = vsel %vm373, %v356, 0
  %v504 = vsel %vm373, %v357, 0
  %v507 = vsel %vm373, %v358, 0
  %v510 = vsel %vm373, %v359, 0
  %v513 = vsel %vm373, %v360, 0
  %v516 = vsel %vm373, %v361, 0
  %vm518 = vcmask 1044480
  %vm519 = vcmask 1045504
  %v520 = vsel %vm518, 4294967295, 65535
  %v521 = vsel %vm519, %v520, 0
  %v523 = vand.u32 %v371, %v521
  %525 = vmatprep.subr.bf16.mxu0 0
  %526 = vmatpush1.bf16.msra.mxu0 0
  %527 = vmatprep.subr.bf16.mxu0 0
  %528 = vmatpush1.bf16.msra.mxu0 0
  %529 = vmatprep.subr.bf16.mxu0 0
  %530 = vmatpush1.bf16.msra.mxu0 0
  %531 = vmatprep.subr.bf16.mxu0 0
  %532 = vmatpush1.bf16.msra.mxu0 0
  %533 = vmatprep.subr.bf16.mxu0 0
  %534 = vmatpush1.bf16.msra.mxu0 0
  %535 = vmatprep.subr.bf16.mxu0 0
  %536 = vmatpush1.bf16.msra.mxu0 0
  %537 = vmatprep.subr.bf16.mxu0 0
  %538 = vmatpush1.bf16.msra.mxu0 %v523
  %539 = vmatprep.subr.bf16.mxu0 0
  %540 = vmatpush1.bf16.msra.mxu0 %v370
  %541 = vmatprep.subr.bf16.mxu0 0
  %542 = vmatpush2.bf16.msra.mxu0 0
  %543 = vmatprep.subr.bf16.mxu0 0
  %544 = vmatpush2.bf16.msra.mxu0 0
  %545 = vmatprep.subr.bf16.mxu0 0
  %546 = vmatpush2.bf16.msra.mxu0 0
  %547 = vmatprep.subr.bf16.mxu0 0
  %548 = vmatpush2.bf16.msra.mxu0 0
  %549 = vmatprep.subr.bf16.mxu0 0
  %550 = vmatpush2.bf16.msra.mxu0 0
  %551 = vmatprep.subr.bf16.mxu0 0
  %552 = vmatpush2.bf16.msra.mxu0 0
  %553 = vmatprep.subr.bf16.mxu0 0
  %554 = vmatpush2.bf16.msra.mxu0 0
  %555 = vmatprep.subr.bf16.mxu0 0
  %556 = vmatpush2.bf16.msra.mxu0 0
  %557 = vmatprep.mubr.bf16.mxu0 0
  %558 = vmatmul.mubr.bf16.gmra.mxu0 %v375
  %v559 = vpop.f32.mrf.mxu0
  %v560 = vadd.f32 %v120, %v559
  %v561 = vpop.f32.mrf.mxu0
  %v562 = vpop.f32.mrf.mxu0
  %v563 = vadd.f32 %v120, %v562
  %v564 = vpop.f32.mrf.mxu0
  %565 = vmatprep.mubr.bf16.mxu0 0
  %566 = vmatmul.mubr.bf16.gmra.mxu0 %v378
  %v567 = vpop.f32.mrf.mxu0
  %v568 = vadd.f32 %v120, %v567
  %v569 = vpop.f32.mrf.mxu0
  %v570 = vpop.f32.mrf.mxu0
  %v571 = vadd.f32 %v120, %v570
  %v572 = vpop.f32.mrf.mxu0
  %573 = vmatprep.mubr.bf16.mxu0 0
  %574 = vmatmul.mubr.bf16.gmra.mxu0 %v381
  %v575 = vpop.f32.mrf.mxu0
  %v576 = vadd.f32 %v120, %v575
  %v577 = vpop.f32.mrf.mxu0
  %v578 = vpop.f32.mrf.mxu0
  %v579 = vadd.f32 %v120, %v578
  %v580 = vpop.f32.mrf.mxu0
  %581 = vmatprep.mubr.bf16.mxu0 0
  %582 = vmatmul.mubr.bf16.gmra.mxu0 %v384
  %v583 = vpop.f32.mrf.mxu0
  %v584 = vadd.f32 %v120, %v583
  %v585 = vpop.f32.mrf.mxu0
  %v586 = vpop.f32.mrf.mxu0
  %v587 = vadd.f32 %v120, %v586
  %v588 = vpop.f32.mrf.mxu0
  %589 = vmatprep.mubr.bf16.mxu0 0
  %590 = vmatmul.mubr.bf16.gmra.mxu0 %v387
  %v591 = vpop.f32.mrf.mxu0
  %v592 = vadd.f32 %v120, %v591
  %v593 = vpop.f32.mrf.mxu0
  %v594 = vpop.f32.mrf.mxu0
  %v595 = vadd.f32 %v120, %v594
  %v596 = vpop.f32.mrf.mxu0
  %597 = vmatprep.mubr.bf16.mxu0 0
  %598 = vmatmul.mubr.bf16.gmra.mxu0 %v390
  %v599 = vpop.f32.mrf.mxu0
  %v600 = vadd.f32 %v120, %v599
  %v601 = vpop.f32.mrf.mxu0
  %v602 = vpop.f32.mrf.mxu0
  %v603 = vadd.f32 %v120, %v602
  %v604 = vpop.f32.mrf.mxu0
  %605 = vmatprep.mubr.bf16.mxu0 0
  %606 = vmatmul.mubr.bf16.gmra.mxu0 %v393
  %v607 = vpop.f32.mrf.mxu0
  %v608 = vadd.f32 %v120, %v607
  %v609 = vpop.f32.mrf.mxu0
  %v610 = vpop.f32.mrf.mxu0
  %v611 = vadd.f32 %v120, %v610
  %v612 = vpop.f32.mrf.mxu0
  %613 = vmatprep.mubr.bf16.mxu0 0
  %614 = vmatmul.mubr.bf16.gmra.mxu0 %v396
  %v615 = vpop.f32.mrf.mxu0
  %v616 = vadd.f32 %v120, %v615
  %v617 = vpop.f32.mrf.mxu0
  %v618 = vpop.f32.mrf.mxu0
  %v619 = vadd.f32 %v120, %v618
  %v620 = vpop.f32.mrf.mxu0
  %621 = vmatprep.mubr.bf16.mxu0 0
  %622 = vmatmul.mubr.bf16.gmra.mxu0 %v399
  %v623 = vpop.f32.mrf.mxu0
  %v624 = vadd.f32 %v120, %v623
  %v625 = vpop.f32.mrf.mxu0
  %v626 = vpop.f32.mrf.mxu0
  %v627 = vadd.f32 %v120, %v626
  %v628 = vpop.f32.mrf.mxu0
  %629 = vmatprep.mubr.bf16.mxu0 0
  %630 = vmatmul.mubr.bf16.gmra.mxu0 %v402
  %v631 = vpop.f32.mrf.mxu0
  %v632 = vadd.f32 %v120, %v631
  %v633 = vpop.f32.mrf.mxu0
  %v634 = vpop.f32.mrf.mxu0
  %v635 = vadd.f32 %v120, %v634
  %v636 = vpop.f32.mrf.mxu0
  %637 = vmatprep.mubr.bf16.mxu0 0
  %638 = vmatmul.mubr.bf16.gmra.mxu0 %v405
  %v639 = vpop.f32.mrf.mxu0
  %v640 = vadd.f32 %v120, %v639
  %v641 = vpop.f32.mrf.mxu0
  %v642 = vpop.f32.mrf.mxu0
  %v643 = vadd.f32 %v120, %v642
  %v644 = vpop.f32.mrf.mxu0
  %645 = vmatprep.mubr.bf16.mxu0 0
  %646 = vmatmul.mubr.bf16.gmra.mxu0 %v408
  %v647 = vpop.f32.mrf.mxu0
  %v648 = vadd.f32 %v120, %v647
  %v649 = vpop.f32.mrf.mxu0
  %v650 = vpop.f32.mrf.mxu0
  %v651 = vadd.f32 %v120, %v650
  %v652 = vpop.f32.mrf.mxu0
  %653 = vmatprep.mubr.bf16.mxu0 0
  %654 = vmatmul.mubr.bf16.gmra.mxu0 %v411
  %v655 = vpop.f32.mrf.mxu0
  %v656 = vadd.f32 %v120, %v655
  %v657 = vpop.f32.mrf.mxu0
  %v658 = vpop.f32.mrf.mxu0
  %v659 = vadd.f32 %v120, %v658
  %v660 = vpop.f32.mrf.mxu0
  %661 = vmatprep.mubr.bf16.mxu0 0
  %662 = vmatmul.mubr.bf16.gmra.mxu0 %v414
  %v663 = vpop.f32.mrf.mxu0
  %v664 = vadd.f32 %v120, %v663
  %v665 = vpop.f32.mrf.mxu0
  %v666 = vpop.f32.mrf.mxu0
  %v667 = vadd.f32 %v120, %v666
  %v668 = vpop.f32.mrf.mxu0
  %669 = vmatprep.mubr.bf16.mxu0 0
  %670 = vmatmul.mubr.bf16.gmra.mxu0 %v417
  %v671 = vpop.f32.mrf.mxu0
  %v672 = vadd.f32 %v120, %v671
  %v673 = vpop.f32.mrf.mxu0
  %v674 = vpop.f32.mrf.mxu0
  %v675 = vadd.f32 %v120, %v674
  %v676 = vpop.f32.mrf.mxu0
  %677 = vmatprep.mubr.bf16.mxu0 0
  %678 = vmatmul.mubr.bf16.gmra.mxu0 %v420
  %v679 = vpop.f32.mrf.mxu0
  %v680 = vadd.f32 %v120, %v679
  %v681 = vpop.f32.mrf.mxu0
  %v682 = vpop.f32.mrf.mxu0
  %v683 = vadd.f32 %v120, %v682
  %v684 = vpop.f32.mrf.mxu0
  %685 = vmatprep.mubr.bf16.mxu0 0
  %686 = vmatmul.mubr.bf16.gmra.mxu0 %v423
  %v687 = vpop.f32.mrf.mxu0
  %v688 = vadd.f32 %v120, %v687
  %v689 = vpop.f32.mrf.mxu0
  %v690 = vpop.f32.mrf.mxu0
  %v691 = vadd.f32 %v120, %v690
  %v692 = vpop.f32.mrf.mxu0
  %693 = vmatprep.mubr.bf16.mxu0 0
  %694 = vmatmul.mubr.bf16.gmra.mxu0 %v426
  %v695 = vpop.f32.mrf.mxu0
  %v696 = vadd.f32 %v120, %v695
  %v697 = vpop.f32.mrf.mxu0
  %v698 = vpop.f32.mrf.mxu0
  %v699 = vadd.f32 %v120, %v698
  %v700 = vpop.f32.mrf.mxu0
  %701 = vmatprep.mubr.bf16.mxu0 0
  %702 = vmatmul.mubr.bf16.gmra.mxu0 %v429
  %v703 = vpop.f32.mrf.mxu0
  %v704 = vadd.f32 %v120, %v703
  %v705 = vpop.f32.mrf.mxu0
  %v706 = vpop.f32.mrf.mxu0
  %v707 = vadd.f32 %v120, %v706
  %v708 = vpop.f32.mrf.mxu0
  %709 = vmatprep.mubr.bf16.mxu0 0
  %710 = vmatmul.mubr.bf16.gmra.mxu0 %v432
  %v711 = vpop.f32.mrf.mxu0
  %v712 = vadd.f32 %v120, %v711
  %v713 = vpop.f32.mrf.mxu0
  %v714 = vpop.f32.mrf.mxu0
  %v715 = vadd.f32 %v120, %v714
  %v716 = vpop.f32.mrf.mxu0
  %717 = vmatprep.mubr.bf16.mxu0 0
  %718 = vmatmul.mubr.bf16.gmra.mxu0 %v435
  %v719 = vpop.f32.mrf.mxu0
  %v720 = vadd.f32 %v120, %v719
  %v721 = vpop.f32.mrf.mxu0
  %v722 = vpop.f32.mrf.mxu0
  %v723 = vadd.f32 %v120, %v722
  %v724 = vpop.f32.mrf.mxu0
  %725 = vmatprep.mubr.bf16.mxu0 0
  %726 = vmatmul.mubr.bf16.gmra.mxu0 %v438
  %v727 = vpop.f32.mrf.mxu0
  %v728 = vadd.f32 %v120, %v727
  %v729 = vpop.f32.mrf.mxu0
  %v730 = vpop.f32.mrf.mxu0
  %v731 = vadd.f32 %v120, %v730
  %v732 = vpop.f32.mrf.mxu0
  %733 = vmatprep.mubr.bf16.mxu0 0
  %734 = vmatmul.mubr.bf16.gmra.mxu0 %v441
  %v735 = vpop.f32.mrf.mxu0
  %v736 = vadd.f32 %v120, %v735
  %v737 = vpop.f32.mrf.mxu0
  %v738 = vpop.f32.mrf.mxu0
  %v739 = vadd.f32 %v120, %v738
  %v740 = vpop.f32.mrf.mxu0
  %741 = vmatprep.mubr.bf16.mxu0 0
  %742 = vmatmul.mubr.bf16.gmra.mxu0 %v444
  %v743 = vpop.f32.mrf.mxu0
  %v744 = vadd.f32 %v120, %v743
  %v745 = vpop.f32.mrf.mxu0
  %v746 = vpop.f32.mrf.mxu0
  %v747 = vadd.f32 %v120, %v746
  %v748 = vpop.f32.mrf.mxu0
  %749 = vmatprep.mubr.bf16.mxu0 0
  %750 = vmatmul.mubr.bf16.gmra.mxu0 %v447
  %v751 = vpop.f32.mrf.mxu0
  %v752 = vadd.f32 %v120, %v751
  %v753 = vpop.f32.mrf.mxu0
  %v754 = vpop.f32.mrf.mxu0
  %v755 = vadd.f32 %v120, %v754
  %v756 = vpop.f32.mrf.mxu0
  %757 = vmatprep.mubr.bf16.mxu0 0
  %758 = vmatmul.mubr.bf16.gmra.mxu0 %v450
  %v759 = vpop.f32.mrf.mxu0
  %v760 = vadd.f32 %v120, %v759
  %v761 = vpop.f32.mrf.mxu0
  %v762 = vpop.f32.mrf.mxu0
  %v763 = vadd.f32 %v120, %v762
  %v764 = vpop.f32.mrf.mxu0
  %765 = vmatprep.mubr.bf16.mxu0 0
  %766 = vmatmul.mubr.bf16.gmra.mxu0 %v453
  %v767 = vpop.f32.mrf.mxu0
  %v768 = vadd.f32 %v120, %v767
  %v769 = vpop.f32.mrf.mxu0
  %v770 = vpop.f32.mrf.mxu0
  %v771 = vadd.f32 %v120, %v770
  %v772 = vpop.f32.mrf.mxu0
  %773 = vmatprep.mubr.bf16.mxu0 0
  %774 = vmatmul.mubr.bf16.gmra.mxu0 %v456
  %v775 = vpop.f32.mrf.mxu0
  %v776 = vadd.f32 %v120, %v775
  %v777 = vpop.f32.mrf.mxu0
  %v778 = vpop.f32.mrf.mxu0
  %v779 = vadd.f32 %v120, %v778
  %v780 = vpop.f32.mrf.mxu0
  %781 = vmatprep.mubr.bf16.mxu0 0
  %782 = vmatmul.mubr.bf16.gmra.mxu0 %v459
  %v783 = vpop.f32.mrf.mxu0
  %v784 = vadd.f32 %v120, %v783
  %v785 = vpop.f32.mrf.mxu0
  %v786 = vpop.f32.mrf.mxu0
  %v787 = vadd.f32 %v120, %v786
  %v788 = vpop.f32.mrf.mxu0
  %789 = vmatprep.mubr.bf16.mxu0 0
  %790 = vmatmul.mubr.bf16.gmra.mxu0 %v462
  %v791 = vpop.f32.mrf.mxu0
  %v792 = vadd.f32 %v120, %v791
  %v793 = vpop.f32.mrf.mxu0
  %v794 = vpop.f32.mrf.mxu0
  %v795 = vadd.f32 %v120, %v794
  %v796 = vpop.f32.mrf.mxu0
  %797 = vmatprep.mubr.bf16.mxu0 0
  %798 = vmatmul.mubr.bf16.gmra.mxu0 %v465
  %v799 = vpop.f32.mrf.mxu0
  %v800 = vadd.f32 %v120, %v799
  %v801 = vpop.f32.mrf.mxu0
  %v802 = vpop.f32.mrf.mxu0
  %v803 = vadd.f32 %v120, %v802
  %v804 = vpop.f32.mrf.mxu0
  %805 = vmatprep.mubr.bf16.mxu0 0
  %806 = vmatmul.mubr.bf16.gmra.mxu0 %v468
  %v807 = vpop.f32.mrf.mxu0
  %v808 = vadd.f32 %v120, %v807
  %v809 = vpop.f32.mrf.mxu0
  %v810 = vpop.f32.mrf.mxu0
  %v811 = vadd.f32 %v120, %v810
  %v812 = vpop.f32.mrf.mxu0
  %813 = vmatprep.mubr.bf16.mxu0 0
  %814 = vmatmul.mubr.bf16.gmra.mxu0 %v471
  %v815 = vpop.f32.mrf.mxu0
  %v816 = vadd.f32 %v120, %v815
  %v817 = vpop.f32.mrf.mxu0
  %v818 = vpop.f32.mrf.mxu0
  %v819 = vadd.f32 %v120, %v818
  %v820 = vpop.f32.mrf.mxu0
  %821 = vmatprep.mubr.bf16.mxu0 0
  %822 = vmatmul.mubr.bf16.gmra.mxu0 %v474
  %v823 = vpop.f32.mrf.mxu0
  %v824 = vadd.f32 %v120, %v823
  %v825 = vpop.f32.mrf.mxu0
  %v826 = vpop.f32.mrf.mxu0
  %v827 = vadd.f32 %v120, %v826
  %v828 = vpop.f32.mrf.mxu0
  %829 = vmatprep.mubr.bf16.mxu0 0
  %830 = vmatmul.mubr.bf16.gmra.mxu0 %v477
  %v831 = vpop.f32.mrf.mxu0
  %v832 = vadd.f32 %v120, %v831
  %v833 = vpop.f32.mrf.mxu0
  %v834 = vpop.f32.mrf.mxu0
  %v835 = vadd.f32 %v120, %v834
  %v836 = vpop.f32.mrf.mxu0
  %837 = vmatprep.mubr.bf16.mxu0 0
  %838 = vmatmul.mubr.bf16.gmra.mxu0 %v480
  %v839 = vpop.f32.mrf.mxu0
  %v840 = vadd.f32 %v120, %v839
  %v841 = vpop.f32.mrf.mxu0
  %v842 = vpop.f32.mrf.mxu0
  %v843 = vadd.f32 %v120, %v842
  %v844 = vpop.f32.mrf.mxu0
  %845 = vmatprep.mubr.bf16.mxu0 0
  %846 = vmatmul.mubr.bf16.gmra.mxu0 %v483
  %v847 = vpop.f32.mrf.mxu0
  %v848 = vadd.f32 %v120, %v847
  %v849 = vpop.f32.mrf.mxu0
  %v850 = vpop.f32.mrf.mxu0
  %v851 = vadd.f32 %v120, %v850
  %v852 = vpop.f32.mrf.mxu0
  %853 = vmatprep.mubr.bf16.mxu0 0
  %854 = vmatmul.mubr.bf16.gmra.mxu0 %v486
  %v855 = vpop.f32.mrf.mxu0
  %v856 = vadd.f32 %v120, %v855
  %v857 = vpop.f32.mrf.mxu0
  %v858 = vpop.f32.mrf.mxu0
  %v859 = vadd.f32 %v120, %v858
  %v860 = vpop.f32.mrf.mxu0
  %861 = vmatprep.mubr.bf16.mxu0 0
  %862 = vmatmul.mubr.bf16.gmra.mxu0 %v489
  %v863 = vpop.f32.mrf.mxu0
  %v864 = vadd.f32 %v120, %v863
  %v865 = vpop.f32.mrf.mxu0
  %v866 = vpop.f32.mrf.mxu0
  %v867 = vadd.f32 %v120, %v866
  %v868 = vpop.f32.mrf.mxu0
  %869 = vmatprep.mubr.bf16.mxu0 0
  %870 = vmatmul.mubr.bf16.gmra.mxu0 %v492
  %v871 = vpop.f32.mrf.mxu0
  %v872 = vadd.f32 %v120, %v871
  %v873 = vpop.f32.mrf.mxu0
  %v874 = vpop.f32.mrf.mxu0
  %v875 = vadd.f32 %v120, %v874
  %v876 = vpop.f32.mrf.mxu0
  %877 = vmatprep.mubr.bf16.mxu0 0
  %878 = vmatmul.mubr.bf16.gmra.mxu0 %v495
  %v879 = vpop.f32.mrf.mxu0
  %v880 = vadd.f32 %v120, %v879
  %v881 = vpop.f32.mrf.mxu0
  %v882 = vpop.f32.mrf.mxu0
  %v883 = vadd.f32 %v120, %v882
  %v884 = vpop.f32.mrf.mxu0
  %885 = vmatprep.mubr.bf16.mxu0 0
  %886 = vmatmul.mubr.bf16.gmra.mxu0 %v498
  %v887 = vpop.f32.mrf.mxu0
  %v888 = vadd.f32 %v120, %v887
  %v889 = vpop.f32.mrf.mxu0
  %v890 = vpop.f32.mrf.mxu0
  %v891 = vadd.f32 %v120, %v890
  %v892 = vpop.f32.mrf.mxu0
  %893 = vmatprep.mubr.bf16.mxu0 0
  %894 = vmatmul.mubr.bf16.gmra.mxu0 %v501
  %v895 = vpop.f32.mrf.mxu0
  %v896 = vadd.f32 %v120, %v895
  %v897 = vpop.f32.mrf.mxu0
  %v898 = vpop.f32.mrf.mxu0
  %v899 = vadd.f32 %v120, %v898
  %v900 = vpop.f32.mrf.mxu0
  %901 = vmatprep.mubr.bf16.mxu0 0
  %902 = vmatmul.mubr.bf16.gmra.mxu0 %v504
  %v903 = vpop.f32.mrf.mxu0
  %v904 = vadd.f32 %v120, %v903
  %v905 = vpop.f32.mrf.mxu0
  %v906 = vpop.f32.mrf.mxu0
  %v907 = vadd.f32 %v120, %v906
  %v908 = vpop.f32.mrf.mxu0
  %909 = vmatprep.mubr.bf16.mxu0 0
  %910 = vmatmul.mubr.bf16.gmra.mxu0 %v507
  %v911 = vpop.f32.mrf.mxu0
  %v912 = vadd.f32 %v120, %v911
  %v913 = vpop.f32.mrf.mxu0
  %v914 = vpop.f32.mrf.mxu0
  %v915 = vadd.f32 %v120, %v914
  %v916 = vpop.f32.mrf.mxu0
  %917 = vmatprep.mubr.bf16.mxu0 0
  %918 = vmatmul.mubr.bf16.gmra.mxu0 %v510
  %v919 = vpop.f32.mrf.mxu0
  %v920 = vadd.f32 %v120, %v919
  %v921 = vpop.f32.mrf.mxu0
  %v922 = vpop.f32.mrf.mxu0
  %v923 = vadd.f32 %v120, %v922
  %v924 = vpop.f32.mrf.mxu0
  %925 = vmatprep.mubr.bf16.mxu0 0
  %926 = vmatmul.mubr.bf16.gmra.mxu0 %v513
  %v927 = vpop.f32.mrf.mxu0
  %v928 = vadd.f32 %v120, %v927
  %v929 = vpop.f32.mrf.mxu0
  %v930 = vpop.f32.mrf.mxu0
  %v931 = vadd.f32 %v120, %v930
  %v932 = vpop.f32.mrf.mxu0
  %933 = vmatprep.mubr.bf16.mxu0 0
  %934 = vmatmul.mubr.bf16.gmra.mxu0 %v516
  %v935 = vpop.f32.mrf.mxu0
  %v936 = vadd.f32 %v120, %v935
  %v937 = vpop.f32.mrf.mxu0
  %v938 = vpop.f32.mrf.mxu0
  %v939 = vadd.f32 %v120, %v938
  %v940 = vpop.f32.mrf.mxu0
  %941 = vdwg.mxu0
  %v942 = vmax.f32 %v560, 0.0
  %v943 = vmax.f32 %v563, 0.0
  %v944 = vmax.f32 %v568, 0.0
  %v945 = vmax.f32 %v571, 0.0
  %v946 = vmax.f32 %v576, 0.0
  %v947 = vmax.f32 %v579, 0.0
  %v948 = vmax.f32 %v584, 0.0
  %v949 = vmax.f32 %v587, 0.0
  %v950 = vmax.f32 %v592, 0.0
  %v951 = vmax.f32 %v595, 0.0
  %v952 = vmax.f32 %v600, 0.0
  %v953 = vmax.f32 %v603, 0.0
  %v954 = vmax.f32 %v608, 0.0
  %v955 = vmax.f32 %v611, 0.0
  %v956 = vmax.f32 %v616, 0.0
  %v957 = vmax.f32 %v619, 0.0
  %v958 = vmax.f32 %v624, 0.0
  %v959 = vmax.f32 %v627, 0.0
  %v960 = vmax.f32 %v632, 0.0
  %v961 = vmax.f32 %v635, 0.0
  %v962 = vmax.f32 %v640, 0.0
  %v963 = vmax.f32 %v643, 0.0
  %v964 = vmax.f32 %v648, 0.0
  %v965 = vmax.f32 %v651, 0.0
  %v966 = vmax.f32 %v656, 0.0
  %v967 = vmax.f32 %v659, 0.0
  %v968 = vmax.f32 %v664, 0.0
  %v969 = vmax.f32 %v667, 0.0
  %v970 = vmax.f32 %v672, 0.0
  %v971 = vmax.f32 %v675, 0.0
  %v972 = vmax.f32 %v680, 0.0
  %v973 = vmax.f32 %v683, 0.0
  %v974 = vmax.f32 %v688, 0.0
  %v975 = vmax.f32 %v691, 0.0
  %v976 = vmax.f32 %v696, 0.0
  %v977 = vmax.f32 %v699, 0.0
  %v978 = vmax.f32 %v704, 0.0
  %v979 = vmax.f32 %v707, 0.0
  %v980 = vmax.f32 %v712, 0.0
  %v981 = vmax.f32 %v715, 0.0
  %v982 = vmax.f32 %v720, 0.0
  %v983 = vmax.f32 %v723, 0.0
  %v984 = vmax.f32 %v728, 0.0
  %v985 = vmax.f32 %v731, 0.0
  %v986 = vmax.f32 %v736, 0.0
  %v987 = vmax.f32 %v739, 0.0
  %v988 = vmax.f32 %v744, 0.0
  %v989 = vmax.f32 %v747, 0.0
  %v990 = vmax.f32 %v752, 0.0
  %v991 = vmax.f32 %v755, 0.0
  %v992 = vmax.f32 %v760, 0.0
  %v993 = vmax.f32 %v763, 0.0
  %v994 = vmax.f32 %v768, 0.0
  %v995 = vmax.f32 %v771, 0.0
  %v996 = vmax.f32 %v776, 0.0
  %v997 = vmax.f32 %v779, 0.0
  %v998 = vmax.f32 %v784, 0.0
  %v999 = vmax.f32 %v787, 0.0
  %v1000 = vmax.f32 %v792, 0.0
  %v1001 = vmax.f32 %v795, 0.0
  %v1002 = vmax.f32 %v800, 0.0
  %v1003 = vmax.f32 %v803, 0.0
  %v1004 = vmax.f32 %v808, 0.0
  %v1005 = vmax.f32 %v811, 0.0
  %v1006 = vmax.f32 %v816, 0.0
  %v1007 = vmax.f32 %v819, 0.0
  %v1008 = vmax.f32 %v824, 0.0
  %v1009 = vmax.f32 %v827, 0.0
  %v1010 = vmax.f32 %v832, 0.0
  %v1011 = vmax.f32 %v835, 0.0
  %v1012 = vmax.f32 %v840, 0.0
  %v1013 = vmax.f32 %v843, 0.0
  %v1014 = vmax.f32 %v848, 0.0
  %v1015 = vmax.f32 %v851, 0.0
  %v1016 = vmax.f32 %v856, 0.0
  %v1017 = vmax.f32 %v859, 0.0
  %v1018 = vmax.f32 %v864, 0.0
  %v1019 = vmax.f32 %v867, 0.0
  %v1020 = vmax.f32 %v872, 0.0
  %v1021 = vmax.f32 %v875, 0.0
  %v1022 = vmax.f32 %v880, 0.0
  %v1023 = vmax.f32 %v883, 0.0
  %v1024 = vmax.f32 %v888, 0.0
  %v1025 = vmax.f32 %v891, 0.0
  %v1026 = vmax.f32 %v896, 0.0
  %v1027 = vmax.f32 %v899, 0.0
  %v1028 = vmax.f32 %v904, 0.0
  %v1029 = vmax.f32 %v907, 0.0
  %v1030 = vmax.f32 %v912, 0.0
  %v1031 = vmax.f32 %v915, 0.0
  %v1032 = vmax.f32 %v920, 0.0
  %v1033 = vmax.f32 %v923, 0.0
  %v1034 = vmax.f32 %v928, 0.0
  %v1035 = vmax.f32 %v931, 0.0
  %v1036 = vmax.f32 %v936, 0.0
  %v1037 = vmax.f32 %v939, 0.0
  %vm1038 = vcmask 64512
  %1039 = vst.msk [vmem:[%s3] sm:$0xff] %vm1038, %v942
  %1040 = vst.msk [vmem:[%s3 + $0x8] sm:$0xff] %vm1038, %v943
  %1041 = vst.msk [vmem:[%s3 + $0x10] sm:$0xff] %vm1038, %v944
  %1042 = vst.msk [vmem:[%s3 + $0x18] sm:$0xff] %vm1038, %v945
  %1043 = vst.msk [vmem:[%s3 + $0x20] sm:$0xff] %vm1038, %v946
  %1044 = vst.msk [vmem:[%s3 + $0x28] sm:$0xff] %vm1038, %v947
  %1045 = vst.msk [vmem:[%s3 + $0x30] sm:$0xff] %vm1038, %v948
  %1046 = vst.msk [vmem:[%s3 + $0x38] sm:$0xff] %vm1038, %v949
  %1047 = vst.msk [vmem:[%s3 + $0x40] sm:$0xff] %vm1038, %v950
  %1048 = vst.msk [vmem:[%s3 + $0x48] sm:$0xff] %vm1038, %v951
  %1049 = vst.msk [vmem:[%s3 + $0x50] sm:$0xff] %vm1038, %v952
  %1050 = vst.msk [vmem:[%s3 + $0x58] sm:$0xff] %vm1038, %v953
  %1051 = vst.msk [vmem:[%s3 + $0x60] sm:$0xff] %vm1038, %v954
  %1052 = vst.msk [vmem:[%s3 + $0x68] sm:$0xff] %vm1038, %v955
  %1053 = vst.msk [vmem:[%s3 + $0x70] sm:$0xff] %vm1038, %v956
  %1054 = vst.msk [vmem:[%s3 + $0x78] sm:$0xff] %vm1038, %v957
  %1055 = vst.msk [vmem:[%s3 + $0x80] sm:$0xff] %vm1038, %v958
  %1056 = vst.msk [vmem:[%s3 + $0x88] sm:$0xff] %vm1038, %v959
  %1057 = vst.msk [vmem:[%s3 + $0x90] sm:$0xff] %vm1038, %v960
  %1058 = vst.msk [vmem:[%s3 + $0x98] sm:$0xff] %vm1038, %v961
  %1059 = vst.msk [vmem:[%s3 + $0xa0] sm:$0xff] %vm1038, %v962
  %1060 = vst.msk [vmem:[%s3 + $0xa8] sm:$0xff] %vm1038, %v963
  %1061 = vst.msk [vmem:[%s3 + $0xb0] sm:$0xff] %vm1038, %v964
  %1062 = vst.msk [vmem:[%s3 + $0xb8] sm:$0xff] %vm1038, %v965
  %1063 = vst.msk [vmem:[%s3 + $0xc0] sm:$0xff] %vm1038, %v966
  %1064 = vst.msk [vmem:[%s3 + $0xc8] sm:$0xff] %vm1038, %v967
  %1065 = vst.msk [vmem:[%s3 + $0xd0] sm:$0xff] %vm1038, %v968
  %1066 = vst.msk [vmem:[%s3 + $0xd8] sm:$0xff] %vm1038, %v969
  %1067 = vst.msk [vmem:[%s3 + $0xe0] sm:$0xff] %vm1038, %v970
  %1068 = vst.msk [vmem:[%s3 + $0xe8] sm:$0xff] %vm1038, %v971
  %1069 = vst.msk [vmem:[%s3 + $0xf0] sm:$0xff] %vm1038, %v972
  %1070 = vst.msk [vmem:[%s3 + $0xf8] sm:$0xff] %vm1038, %v973
  %1071 = vst.msk [vmem:[%s3 + $0x100] sm:$0xff] %vm1038, %v974
  %1072 = vst.msk [vmem:[%s3 + $0x108] sm:$0xff] %vm1038, %v975
  %1073 = vst.msk [vmem:[%s3 + $0x110] sm:$0xff] %vm1038, %v976
  %1074 = vst.msk [vmem:[%s3 + $0x118] sm:$0xff] %vm1038, %v977
  %1075 = vst.msk [vmem:[%s3 + $0x120] sm:$0xff] %vm1038, %v978
  %1076 = vst.msk [vmem:[%s3 + $0x128] sm:$0xff] %vm1038, %v979
  %1077 = vst.msk [vmem:[%s3 + $0x130] sm:$0xff] %vm1038, %v980
  %1078 = vst.msk [vmem:[%s3 + $0x138] sm:$0xff] %vm1038, %v981
  %1079 = vst.msk [vmem:[%s3 + $0x140] sm:$0xff] %vm1038, %v982
  %1080 = vst.msk [vmem:[%s3 + $0x148] sm:$0xff] %vm1038, %v983
  %1081 = vst.msk [vmem:[%s3 + $0x150] sm:$0xff] %vm1038, %v984
  %1082 = vst.msk [vmem:[%s3 + $0x158] sm:$0xff] %vm1038, %v985
  %1083 = vst.msk [vmem:[%s3 + $0x160] sm:$0xff] %vm1038, %v986
  %1084 = vst.msk [vmem:[%s3 + $0x168] sm:$0xff] %vm1038, %v987
  %1085 = vst.msk [vmem:[%s3 + $0x170] sm:$0xff] %vm1038, %v988
  %1086 = vst.msk [vmem:[%s3 + $0x178] sm:$0xff] %vm1038, %v989
  %1087 = vst.msk [vmem:[%s3 + $0x180] sm:$0xff] %vm1038, %v990
  %1088 = vst.msk [vmem:[%s3 + $0x188] sm:$0xff] %vm1038, %v991
  %1089 = vst.msk [vmem:[%s3 + $0x190] sm:$0xff] %vm1038, %v992
  %1090 = vst.msk [vmem:[%s3 + $0x198] sm:$0xff] %vm1038, %v993
  %1091 = vst.msk [vmem:[%s3 + $0x1a0] sm:$0xff] %vm1038, %v994
  %1092 = vst.msk [vmem:[%s3 + $0x1a8] sm:$0xff] %vm1038, %v995
  %1093 = vst.msk [vmem:[%s3 + $0x1b0] sm:$0xff] %vm1038, %v996
  %1094 = vst.msk [vmem:[%s3 + $0x1b8] sm:$0xff] %vm1038, %v997
  %1095 = vst.msk [vmem:[%s3 + $0x1c0] sm:$0xff] %vm1038, %v998
  %1096 = vst.msk [vmem:[%s3 + $0x1c8] sm:$0xff] %vm1038, %v999
  %1097 = vst.msk [vmem:[%s3 + $0x1d0] sm:$0xff] %vm1038, %v1000
  %1098 = vst.msk [vmem:[%s3 + $0x1d8] sm:$0xff] %vm1038, %v1001
  %1099 = vst.msk [vmem:[%s3 + $0x1e0] sm:$0xff] %vm1038, %v1002
  %1100 = vst.msk [vmem:[%s3 + $0x1e8] sm:$0xff] %vm1038, %v1003
  %1101 = vst.msk [vmem:[%s3 + $0x1f0] sm:$0xff] %vm1038, %v1004
  %1102 = vst.msk [vmem:[%s3 + $0x1f8] sm:$0xff] %vm1038, %v1005
  %1103 = vst.msk [vmem:[%s3 + $0x200] sm:$0xff] %vm1038, %v1006
  %1104 = vst.msk [vmem:[%s3 + $0x208] sm:$0xff] %vm1038, %v1007
  %1105 = vst.msk [vmem:[%s3 + $0x210] sm:$0xff] %vm1038, %v1008
  %1106 = vst.msk [vmem:[%s3 + $0x218] sm:$0xff] %vm1038, %v1009
  %1107 = vst.msk [vmem:[%s3 + $0x220] sm:$0xff] %vm1038, %v1010
  %1108 = vst.msk [vmem:[%s3 + $0x228] sm:$0xff] %vm1038, %v1011
  %1109 = vst.msk [vmem:[%s3 + $0x230] sm:$0xff] %vm1038, %v1012
  %1110 = vst.msk [vmem:[%s3 + $0x238] sm:$0xff] %vm1038, %v1013
  %1111 = vst.msk [vmem:[%s3 + $0x240] sm:$0xff] %vm1038, %v1014
  %1112 = vst.msk [vmem:[%s3 + $0x248] sm:$0xff] %vm1038, %v1015
  %1113 = vst.msk [vmem:[%s3 + $0x250] sm:$0xff] %vm1038, %v1016
  %1114 = vst.msk [vmem:[%s3 + $0x258] sm:$0xff] %vm1038, %v1017
  %1115 = vst.msk [vmem:[%s3 + $0x260] sm:$0xff] %vm1038, %v1018
  %1116 = vst.msk [vmem:[%s3 + $0x268] sm:$0xff] %vm1038, %v1019
  %1117 = vst.msk [vmem:[%s3 + $0x270] sm:$0xff] %vm1038, %v1020
  %1118 = vst.msk [vmem:[%s3 + $0x278] sm:$0xff] %vm1038, %v1021
  %1119 = vst.msk [vmem:[%s3 + $0x280] sm:$0xff] %vm1038, %v1022
  %1120 = vst.msk [vmem:[%s3 + $0x288] sm:$0xff] %vm1038, %v1023
  %1121 = vst.msk [vmem:[%s3 + $0x290] sm:$0xff] %vm1038, %v1024
  %1122 = vst.msk [vmem:[%s3 + $0x298] sm:$0xff] %vm1038, %v1025
  %1123 = vst.msk [vmem:[%s3 + $0x2a0] sm:$0xff] %vm1038, %v1026
  %1124 = vst.msk [vmem:[%s3 + $0x2a8] sm:$0xff] %vm1038, %v1027
  %1125 = vst.msk [vmem:[%s3 + $0x2b0] sm:$0xff] %vm1038, %v1028
  %1126 = vst.msk [vmem:[%s3 + $0x2b8] sm:$0xff] %vm1038, %v1029
  %1127 = vst.msk [vmem:[%s3 + $0x2c0] sm:$0xff] %vm1038, %v1030
  %1128 = vst.msk [vmem:[%s3 + $0x2c8] sm:$0xff] %vm1038, %v1031
  %1129 = vst.msk [vmem:[%s3 + $0x2d0] sm:$0xff] %vm1038, %v1032
  %1130 = vst.msk [vmem:[%s3 + $0x2d8] sm:$0xff] %vm1038, %v1033
  %1131 = vst.msk [vmem:[%s3 + $0x2e0] sm:$0xff] %vm1038, %v1034
  %1132 = vst.msk [vmem:[%s3 + $0x2e8] sm:$0xff] %vm1038, %v1035
  %1133 = vst.msk [vmem:[%s3 + $0x2f0] sm:$0xff] %vm1038, %v1036
  %1134 = vst.msk [vmem:[%s3 + $0x2f8] sm:$0xff] %vm1038, %v1037
  // Predicated region
  $region14: #{tpu_custom_call.1} parent=0 // pred_check
    _
  $region15: #{tpu_custom_call.1} parent=0 // pred_check_branch
    %1136 = sbr.rel (0) target = $region17
  $region16: #{tpu_custom_call.1} parent=0 // pred_region
    _
  $region17: #{tpu_custom_call.1} parent=0 // pred_fallthru
    _
  // Predicated region
  $region18: #{tpu_custom_call.1} parent=0 // pred_check
    _
  $region19: #{tpu_custom_call.1} parent=0 // pred_check_branch
    %1138 = sbr.rel (0) target = $region21
  $region20: #{tpu_custom_call.1} parent=0 // pred_region
    _
  $region21: #{tpu_custom_call.1} parent=0 // pred_fallthru
    _

</llo_original>
